<compile_context>
chip_gen: v7x
topology: tpu7x:2x2x1
jax: 0.10.0
libtpu: 0.0.40
codegen_flags: <defaults>
</compile_context>

<pallas_src>
import functools

import jax
import jax.numpy as jnp
from jax.experimental import pallas as pl
from jax.experimental.pallas import tpu as pltpu

LANE = 128
SUBLANE = 8
MXU_ROWS = 256  # v6e/v7x systolic depth (also a fine granule on v5e's 4x128^2 MXU)


def _round_up(x, m):
    return (x + m - 1) // m * m


def _cdiv(a, b):
    return -(-a // b)


def _pad2d(a, rows, cols):
    r, c = a.shape
    if r == rows and c == cols:
        return a
    return jnp.pad(a, ((0, rows - r), (0, cols - c)))


def _policy_mlp_kernel(x_ref,
                       w1_ref, b1_ref,
                       w2_ref, b2_ref,
                       w3_ref, b3_ref,
                       w4_ref, b4_ref,
                       out_ref):
    """One batch tile: 3x (bf16 matmul + f32 bias + ReLU) then bf16 matmul + bias + tanh."""
    h = x_ref[...].astype(jnp.bfloat16)

    h = jnp.dot(h, w1_ref[...], preferred_element_type=jnp.float32) + b1_ref[...]
    h = jnp.maximum(h, 0.0)

    h = jnp.dot(h.astype(jnp.bfloat16), w2_ref[...],
                preferred_element_type=jnp.float32) + b2_ref[...]
    h = jnp.maximum(h, 0.0)

    h = jnp.dot(h.astype(jnp.bfloat16), w3_ref[...],
                preferred_element_type=jnp.float32) + b3_ref[...]
    h = jnp.maximum(h, 0.0)

    h = jnp.dot(h.astype(jnp.bfloat16), w4_ref[...],
                preferred_element_type=jnp.float32) + b4_ref[...]
    out_ref[...] = jnp.tanh(h).astype(out_ref.dtype)  # single lane-dense store per tile


def prepare_params(params, weight_dtype=jnp.bfloat16):
    """Pad feature dims to 128-lane multiples and cast weights to bf16, ONCE (outside jit).

    Weights are stored [in, out] (== torch Linear's x @ W.T + b).  The layer-1 K dim is
    kept at the natural state_dim (no padded-K work / extra x DMA bytes); hidden/output
    dims are zero-padded to 128 multiples, which is exact under ReLU/tanh.
    """
    state_dim, hidden_dim = params["w1"].shape
    action_dim = params["w4"].shape[1]
    d_h = _round_up(hidden_dim, LANE)
    d_out = _round_up(action_dim, LANE)

    prepared = {
        "w1": _pad2d(params["w1"], state_dim, d_h).astype(weight_dtype),
        "w2": _pad2d(params["w2"], d_h, d_h).astype(weight_dtype),
        "w3": _pad2d(params["w3"], d_h, d_h).astype(weight_dtype),
        "w4": _pad2d(params["w4"], d_h, d_out).astype(weight_dtype),
        "b1": _pad2d(params["b1"], 1, d_h).astype(jnp.float32),
        "b2": _pad2d(params["b2"], 1, d_h).astype(jnp.float32),
        "b3": _pad2d(params["b3"], 1, d_h).astype(jnp.float32),
        "b4": _pad2d(params["b4"], 1, d_out).astype(jnp.float32),
    }
    return prepared, action_dim


def _choose_batch_tile(B, block_rows):
    """MXU-aligned batch tile with bounded padding waste and >=2 tiles for big batches."""
    if B <= SUBLANE:
        return SUBLANE
    # >= 2 grid steps when batch allows: shards across v7x's 2 TCs ("parallel" axis)
    # and lets the next x-load / previous out-store DMA overlap compute.
    min_tiles = 2 if B >= 2 * MXU_ROWS else 1
    n_tiles = max(_cdiv(B, block_rows), min_tiles)
    tb = _cdiv(B, n_tiles)
    if tb >= MXU_ROWS:
        granule = MXU_ROWS
    elif tb >= 128:
        granule = 128
    else:
        granule = SUBLANE
    return _round_up(tb, granule)


@functools.partial(jax.jit, static_argnames=("action_dim", "block_rows"))
def policy_network_forward(state, prepared, *, action_dim, block_rows=1024):
    """state: [B, state_dim] f32. prepared: output of prepare_params (bf16 weights, f32 biases)."""
    B, state_dim = state.shape
    d_h = prepared["w1"].shape[1]
    d_out = prepared["w4"].shape[1]

    # ---- batch tiling ----
    tb = _choose_batch_tile(B, block_rows)
    b_pad = _round_up(B, tb)
    x = state if b_pad == B else jnp.pad(state, ((0, b_pad - B), (0, 0)))
    grid = (b_pad // tb,)

    # ---- VMEM budget (bf16 weights; assume Pallas double-buffers everything) ----
    bf16b, f32b = 2, 4
    weight_bytes = (state_dim * d_h + 2 * d_h * d_h + d_h * d_out) * bf16b
    bias_bytes = (3 * d_h + d_out) * f32b
    io_bytes = 2 * (tb * state_dim + tb * d_out) * f32b          # double-buffered x/out
    scratch_bytes = 6 * tb * d_h * f32b                          # f32 + bf16 intermediates
    need = 2 * (weight_bytes + bias_bytes) + io_bytes + scratch_bytes
    vmem_limit = int(min(48 * 1024 * 1024, max(2 * need, 4 * 1024 * 1024)))

    flops = 2 * b_pad * (state_dim * d_h + 2 * d_h * d_h + d_h * d_out)
    bytes_accessed = (b_pad * (state_dim + d_out) * f32b) + weight_bytes + bias_bytes

    tile_x = pl.BlockSpec((tb, state_dim), lambda i: (i, 0))
    tile_o = pl.BlockSpec((tb, d_out), lambda i: (i, 0))

    def resident(arr):  # grid-invariant weights/biases stay put in VMEM across batch tiles
        return pl.BlockSpec(arr.shape, lambda i: (0, 0))

    out_padded = pl.pallas_call(
        _policy_mlp_kernel,
        out_shape=jax.ShapeDtypeStruct((b_pad, d_out), jnp.float32),
        grid=grid,
        in_specs=[
            tile_x,
            resident(prepared["w1"]), resident(prepared["b1"]),
            resident(prepared["w2"]), resident(prepared["b2"]),
            resident(prepared["w3"]), resident(prepared["b3"]),
            resident(prepared["w4"]), resident(prepared["b4"]),
        ],
        out_specs=tile_o,
        compiler_params=pltpu.CompilerParams(
            dimension_semantics=("parallel",),      # batch tiles shard across v7x's 2 TCs
            vmem_limit_bytes=vmem_limit,
        ),
        cost_estimate=pl.CostEstimate(
            flops=flops,
            transcendentals=b_pad * d_out,          # tanh
            bytes_accessed=bytes_accessed,
        ),
    )(x,
      prepared["w1"], prepared["b1"],
      prepared["w2"], prepared["b2"],
      prepared["w3"], prepared["b3"],
      prepared["w4"], prepared["b4"])

    return out_padded[:B, :action_dim]


def init_params(key, state_dim, action_dim, hidden_dim=256):
    """PyTorch-like uniform init; weights stored [in, out] (transposed vs. torch Linear.weight)."""
    dims = [(state_dim, hidden_dim),
            (hidden_dim, hidden_dim),
            (hidden_dim, hidden_dim),
            (hidden_dim, action_dim)]
    params = {}
    for i, (d_in, d_out) in enumerate(dims, start=1):
        key, kw, kb = jax.random.split(key, 3)
        bound = 1.0 / jnp.sqrt(d_in)
        params[f"w{i}"] = jax.random.uniform(kw, (d_in, d_out), jnp.float32, -bound, bound)
        params[f"b{i}"] = jax.random.uniform(kb, (1, d_out), jnp.float32, -bound, bound)
    return params


def _reference_forward(state, params):
    """Reference with the same numerics (bf16 matmul operands, f32 accumulation)."""
    def lin(h, w, b):
        return jnp.dot(h.astype(jnp.bfloat16), w.astype(jnp.bfloat16),
                       preferred_element_type=jnp.float32) + b
    h = jnp.maximum(lin(state, params["w1"], params["b1"]), 0.0)
    h = jnp.maximum(lin(h, params["w2"], params["b2"]), 0.0)
    h = jnp.maximum(lin(h, params["w3"], params["b3"]), 0.0)
    return jnp.tanh(lin(h, params["w4"], params["b4"]))


if __name__ == "__main__":
    key = jax.random.PRNGKey(0)
    k_state, k_params = jax.random.split(key)

    batch = 8
    state_dim = 16
    action_dim = 8
    hidden_dim = 256   # module default

    state = jax.random.normal(k_state, (batch, state_dim), jnp.float32)
    params = init_params(k_params, state_dim, action_dim, hidden_dim)

    # One-time (outside the hot path): pad feature dims + cast weights to bf16.
    prepared, adim = prepare_params(params)

    out = policy_network_forward(state, prepared, action_dim=adim)
    out = jax.block_until_ready(out)

    ref = _reference_forward(state, params)
    assert out.shape == (batch, action_dim), f"bad shape {out.shape}"
    assert jnp.allclose(out, ref, atol=1e-2, rtol=1e-2), "Pallas output mismatch vs reference"

    print("KERNEL_OK")
</pallas_src>

<mosaic_0001>
module attributes {stable_mosaic.version = 11 : i64} {
  func.func @_policy_mlp_kernel(%arg0: i32, %arg1: memref<8x16xf32, #tpu.memory_space<vmem>>, %arg2: memref<16x256xbf16, #tpu.memory_space<vmem>>, %arg3: memref<1x256xf32, #tpu.memory_space<vmem>>, %arg4: memref<256x256xbf16, #tpu.memory_space<vmem>>, %arg5: memref<1x256xf32, #tpu.memory_space<vmem>>, %arg6: memref<256x256xbf16, #tpu.memory_space<vmem>>, %arg7: memref<1x256xf32, #tpu.memory_space<vmem>>, %arg8: memref<256x128xbf16, #tpu.memory_space<vmem>>, %arg9: memref<1x128xf32, #tpu.memory_space<vmem>>, %arg10: memref<8x128xf32, #tpu.memory_space<vmem>>) attributes {dimension_semantics = [#tpu.dimension_semantics<parallel>], iteration_bounds = array<i64: 1>, scalar_prefetch = 0 : i64, scratch_operands = 0 : i64, tpu.core_type = #tpu.core_type<tc>, window_params = [{transform_indices = @transform_0, window_bounds = array<i64: 8, 16>}, {pipeline_mode = #tpu.pipeline_mode<synchronous>, transform_indices = @transform_1, window_bounds = array<i64: 16, 256>}, {pipeline_mode = #tpu.pipeline_mode<synchronous>, transform_indices = @transform_2, window_bounds = array<i64: 1, 256>}, {pipeline_mode = #tpu.pipeline_mode<synchronous>, transform_indices = @transform_3, window_bounds = array<i64: 256, 256>}, {pipeline_mode = #tpu.pipeline_mode<synchronous>, transform_indices = @transform_4, window_bounds = array<i64: 1, 256>}, {pipeline_mode = #tpu.pipeline_mode<synchronous>, transform_indices = @transform_5, window_bounds = array<i64: 256, 256>}, {pipeline_mode = #tpu.pipeline_mode<synchronous>, transform_indices = @transform_6, window_bounds = array<i64: 1, 256>}, {pipeline_mode = #tpu.pipeline_mode<synchronous>, transform_indices = @transform_7, window_bounds = array<i64: 256, 128>}, {pipeline_mode = #tpu.pipeline_mode<synchronous>, transform_indices = @transform_8, window_bounds = array<i64: 1, 128>}, {transform_indices = @transform_9, window_bounds = array<i64: 8, 128>}]} {
    %c0 = arith.constant 0 : index
    %c0_0 = arith.constant 0 : index
    %0 = vector.load %arg1[%c0, %c0_0] : memref<8x16xf32, #tpu.memory_space<vmem>>, vector<8x16xf32>
    %1 = arith.truncf %0 : vector<8x16xf32> to vector<8x16xbf16>
    %c0_1 = arith.constant 0 : index
    %c0_2 = arith.constant 0 : index
    %2 = vector.load %arg2[%c0_1, %c0_2] : memref<16x256xbf16, #tpu.memory_space<vmem>>, vector<16x256xbf16>
    %cst = arith.constant dense<0.000000e+00> : vector<8x256xf32>
    %3 = tpu.matmul %1, %2, %cst {dimension_numbers = #tpu.dot_dimension_numbers<[1], [0], [0], [1], [0, 0, 1, 1], [], []>} : vector<8x16xbf16>, vector<16x256xbf16>, vector<8x256xf32> -> vector<8x256xf32>
    %c0_3 = arith.constant 0 : index
    %c0_4 = arith.constant 0 : index
    %4 = vector.load %arg3[%c0_3, %c0_4] : memref<1x256xf32, #tpu.memory_space<vmem>>, vector<1x256xf32>
    %5 = vector.broadcast %4 : vector<1x256xf32> to vector<8x256xf32>
    %6 = arith.addf %3, %5 : vector<8x256xf32>
    %cst_5 = arith.constant 0.000000e+00 : f32
    %7 = vector.broadcast %cst_5 : f32 to vector<8x256xf32>
    %8 = arith.maximumf %6, %7 : vector<8x256xf32>
    %9 = arith.truncf %8 : vector<8x256xf32> to vector<8x256xbf16>
    %c0_6 = arith.constant 0 : index
    %c0_7 = arith.constant 0 : index
    %10 = vector.load %arg4[%c0_6, %c0_7] : memref<256x256xbf16, #tpu.memory_space<vmem>>, vector<256x256xbf16>
    %cst_8 = arith.constant dense<0.000000e+00> : vector<8x256xf32>
    %11 = tpu.matmul %9, %10, %cst_8 {dimension_numbers = #tpu.dot_dimension_numbers<[1], [0], [0], [1], [0, 0, 1, 1], [], []>} : vector<8x256xbf16>, vector<256x256xbf16>, vector<8x256xf32> -> vector<8x256xf32>
    %c0_9 = arith.constant 0 : index
    %c0_10 = arith.constant 0 : index
    %12 = vector.load %arg5[%c0_9, %c0_10] : memref<1x256xf32, #tpu.memory_space<vmem>>, vector<1x256xf32>
    %13 = vector.broadcast %12 : vector<1x256xf32> to vector<8x256xf32>
    %14 = arith.addf %11, %13 : vector<8x256xf32>
    %cst_11 = arith.constant 0.000000e+00 : f32
    %15 = vector.broadcast %cst_11 : f32 to vector<8x256xf32>
    %16 = arith.maximumf %14, %15 : vector<8x256xf32>
    %17 = arith.truncf %16 : vector<8x256xf32> to vector<8x256xbf16>
    %c0_12 = arith.constant 0 : index
    %c0_13 = arith.constant 0 : index
    %18 = vector.load %arg6[%c0_12, %c0_13] : memref<256x256xbf16, #tpu.memory_space<vmem>>, vector<256x256xbf16>
    %cst_14 = arith.constant dense<0.000000e+00> : vector<8x256xf32>
    %19 = tpu.matmul %17, %18, %cst_14 {dimension_numbers = #tpu.dot_dimension_numbers<[1], [0], [0], [1], [0, 0, 1, 1], [], []>} : vector<8x256xbf16>, vector<256x256xbf16>, vector<8x256xf32> -> vector<8x256xf32>
    %c0_15 = arith.constant 0 : index
    %c0_16 = arith.constant 0 : index
    %20 = vector.load %arg7[%c0_15, %c0_16] : memref<1x256xf32, #tpu.memory_space<vmem>>, vector<1x256xf32>
    %21 = vector.broadcast %20 : vector<1x256xf32> to vector<8x256xf32>
    %22 = arith.addf %19, %21 : vector<8x256xf32>
    %cst_17 = arith.constant 0.000000e+00 : f32
    %23 = vector.broadcast %cst_17 : f32 to vector<8x256xf32>
    %24 = arith.maximumf %22, %23 : vector<8x256xf32>
    %25 = arith.truncf %24 : vector<8x256xf32> to vector<8x256xbf16>
    %c0_18 = arith.constant 0 : index
    %c0_19 = arith.constant 0 : index
    %26 = vector.load %arg8[%c0_18, %c0_19] : memref<256x128xbf16, #tpu.memory_space<vmem>>, vector<256x128xbf16>
    %cst_20 = arith.constant dense<0.000000e+00> : vector<8x128xf32>
    %27 = tpu.matmul %25, %26, %cst_20 {dimension_numbers = #tpu.dot_dimension_numbers<[1], [0], [0], [1], [0, 0, 1, 1], [], []>} : vector<8x256xbf16>, vector<256x128xbf16>, vector<8x128xf32> -> vector<8x128xf32>
    %c0_21 = arith.constant 0 : index
    %c0_22 = arith.constant 0 : index
    %28 = vector.load %arg9[%c0_21, %c0_22] : memref<1x128xf32, #tpu.memory_space<vmem>>, vector<1x128xf32>
    %29 = vector.broadcast %28 : vector<1x128xf32> to vector<8x128xf32>
    %30 = arith.addf %27, %29 : vector<8x128xf32>
    %31 = math.tanh %30 : vector<8x128xf32>
    %c0_23 = arith.constant 0 : index
    %c0_24 = arith.constant 0 : index
    %32 = vector.load %arg10[%c0_23, %c0_24] : memref<8x128xf32, #tpu.memory_space<vmem>>, vector<8x128xf32>
    tpu.vector_store %arg10[%c0_23, %c0_24], %31 {strides = array<i32>} : memref<8x128xf32, #tpu.memory_space<vmem>>, vector<8x128xf32>,
    return
  }
  func.func @transform_0(%arg0: i32) -> (i32, i32) {
    %c0_i32 = arith.constant 0 : i32
    %c0_i32_0 = arith.constant 0 : i32
    return %arg0, %c0_i32 : i32, i32
  }
  func.func @transform_1(%arg0: i32) -> (i32, i32) {
    %c0_i32 = arith.constant 0 : i32
    %c0_i32_0 = arith.constant 0 : i32
    %c0_i32_1 = arith.constant 0 : i32
    return %c0_i32, %c0_i32_0 : i32, i32
  }
  func.func @transform_2(%arg0: i32) -> (i32, i32) {
    %c0_i32 = arith.constant 0 : i32
    %c0_i32_0 = arith.constant 0 : i32
    %c0_i32_1 = arith.constant 0 : i32
    return %c0_i32, %c0_i32_0 : i32, i32
  }
  func.func @transform_3(%arg0: i32) -> (i32, i32) {
    %c0_i32 = arith.constant 0 : i32
    %c0_i32_0 = arith.constant 0 : i32
    %c0_i32_1 = arith.constant 0 : i32
    return %c0_i32, %c0_i32_0 : i32, i32
  }
  func.func @transform_4(%arg0: i32) -> (i32, i32) {
    %c0_i32 = arith.constant 0 : i32
    %c0_i32_0 = arith.constant 0 : i32
    %c0_i32_1 = arith.constant 0 : i32
    return %c0_i32, %c0_i32_0 : i32, i32
  }
  func.func @transform_5(%arg0: i32) -> (i32, i32) {
    %c0_i32 = arith.constant 0 : i32
    %c0_i32_0 = arith.constant 0 : i32
    %c0_i32_1 = arith.constant 0 : i32
    return %c0_i32, %c0_i32_0 : i32, i32
  }
  func.func @transform_6(%arg0: i32) -> (i32, i32) {
    %c0_i32 = arith.constant 0 : i32
    %c0_i32_0 = arith.constant 0 : i32
    %c0_i32_1 = arith.constant 0 : i32
    return %c0_i32, %c0_i32_0 : i32, i32
  }
  func.func @transform_7(%arg0: i32) -> (i32, i32) {
    %c0_i32 = arith.constant 0 : i32
    %c0_i32_0 = arith.constant 0 : i32
    %c0_i32_1 = arith.constant 0 : i32
    return %c0_i32, %c0_i32_0 : i32, i32
  }
  func.func @transform_8(%arg0: i32) -> (i32, i32) {
    %c0_i32 = arith.constant 0 : i32
    %c0_i32_0 = arith.constant 0 : i32
    %c0_i32_1 = arith.constant 0 : i32
    return %c0_i32, %c0_i32_0 : i32, i32
  }
  func.func @transform_9(%arg0: i32) -> (i32, i32) {
    %c0_i32 = arith.constant 0 : i32
    %c0_i32_0 = arith.constant 0 : i32
    return %arg0, %c0_i32 : i32, i32
  }
}

</mosaic_0001>

<llo_original>
// kernel: policy_network_forward.1
$region0: #{policy_network_forward.1}
  #allocation0 [shape = 'u32[]', space=smem, size = 0x4, offset = 0x4, fixed_abs, tag = 'smem constant byte address 0x4 - core index']
  #allocation1 [shape = 'u32[144,128]{1,0:T(1,128)}', space=vmem, size = 0x12000, scoped, tag = 'internal scratch']
  %s0 = inlined_call_operand.hbm [shape: f32[8,16], index: 0, kind: input, shape index: {}]
  %s1 = inlined_call_operand.vmem [shape: bf16[16,256], index: 1, kind: input, shape index: {}]
  %s2 = inlined_call_operand.vmem [shape: f32[1,256], index: 2, kind: input, shape index: {}]
  %s3 = inlined_call_operand.hbm [shape: bf16[256,256], index: 3, kind: input, shape index: {}]
  %s4 = inlined_call_operand.hbm [shape: f32[1,256], index: 4, kind: input, shape index: {}]
  %s5 = inlined_call_operand.hbm [shape: bf16[256,256], index: 5, kind: input, shape index: {}]
  %s6 = inlined_call_operand.hbm [shape: f32[1,256], index: 6, kind: input, shape index: {}]
  %s7 = inlined_call_operand.hbm [shape: bf16[256,128], index: 7, kind: input, shape index: {}]
  %s8 = inlined_call_operand.hbm [shape: f32[1,128], index: 8, kind: input, shape index: {}]
  %s9 = inlined_call_operand.hbm [shape: f32[8,128], index: 9, kind: output, shape index: {}]
  %s10 = sld [smem:[#allocation0]]
  $region74: #{policy_network_forward.1} parent=0
    _
  %s12 = ssub.s32 1, %s10
  %s13 = scalar_select 0, %s12, %s10
  $region1: #{policy_network_forward.1} parent=0
    #allocation2 [shape = 'u8[4096]{0}', space=vmem, size = 0x1000, scoped, tag = 'input window, operand 0, single buffered']
    #allocation3 [shape = 's32[1]{0}', space=sflag, size = 0x4, scoped, tag = 'scoped memory for policy_network_forward.1']
    #allocation4 [shape = 's32[1]{0}', space=sflag, size = 0x4, scoped, tag = 'scoped memory for policy_network_forward.1']
    #allocation5 [shape = 'u8[131072]{0}', space=vmem, size = 0x20000, scoped, tag = 'input window, operand 3, single buffered']
    #allocation6 [shape = 's32[1]{0}', space=sflag, size = 0x4, scoped, tag = 'scoped memory for policy_network_forward.1']
    #allocation7 [shape = 'u8[1024]{0}', space=vmem, size = 0x400, scoped, tag = 'input window, operand 4, single buffered']
    #allocation8 [shape = 'u8[131072]{0}', space=vmem, size = 0x20000, scoped, tag = 'input window, operand 5, single buffered']
    #allocation9 [shape = 's32[1]{0}', space=sflag, size = 0x4, scoped, tag = 'scoped memory for policy_network_forward.1']
    #allocation10 [shape = 'u8[1024]{0}', space=vmem, size = 0x400, scoped, tag = 'input window, operand 6, single buffered']
    #allocation11 [shape = 'u8[65536]{0}', space=vmem, size = 0x10000, scoped, tag = 'input window, operand 7, single buffered']
    #allocation12 [shape = 's32[1]{0}', space=sflag, size = 0x4, scoped, tag = 'scoped memory for policy_network_forward.1']
    #allocation13 [shape = 'u8[512]{0}', space=vmem, size = 0x400, scoped, tag = 'input window, operand 8, single buffered']
    #allocation14 [shape = 'u8[4096]{0}', space=vmem, size = 0x1000, scoped, tag = 'output window, operand 0, single buffered']
    %14 = vsyncpa [#allocation3], 0
    %15 = vsyncpa [#allocation6], 0
    %16 = vsyncpa [#allocation9], 0
    %17 = vsyncpa [#allocation12], 0
    %18 = vsyncpa [#allocation4], 0
    // Predicated region
    $region2: #{policy_network_forward.1} parent=1 // pred_check
      _
    $region3: #{policy_network_forward.1} parent=1 // pred_check_branch
      %20 = sbr.rel (0) target = $region5
    $region4: #{policy_network_forward.1} parent=1 // pred_region
      %s22 = ssub.s32 128, 128
      %23 = vsyncadd [#allocation3], %s22
      %s25 = sshll.u32 [#allocation2], 4
      %s26 = int_to_ptr.vmem [resolvable:$true] %s25
      %28 = dma.hbm_to_vmem [thread:$0]  %s0, 128, %s26, [#allocation3]
    $region5: #{policy_network_forward.1} parent=1 // pred_fallthru
      _
    // Predicated region
    $region6: #{policy_network_forward.1} parent=1 // pred_check
      _
    $region7: #{policy_network_forward.1} parent=1 // pred_check_branch
      %30 = sbr.rel (0) target = $region9
    $region8: #{policy_network_forward.1} parent=1 // pred_region
      _
    $region9: #{policy_network_forward.1} parent=1 // pred_fallthru
      _
    // Predicated region
    $region10: #{policy_network_forward.1} parent=1 // pred_check
      _
    $region11: #{policy_network_forward.1} parent=1 // pred_check_branch
      %32 = sbr.rel (0) target = $region13
    $region12: #{policy_network_forward.1} parent=1 // pred_region
      _
    $region13: #{policy_network_forward.1} parent=1 // pred_fallthru
      _
    // Predicated region
    $region14: #{policy_network_forward.1} parent=1 // pred_check
      _
    $region15: #{policy_network_forward.1} parent=1 // pred_check_branch
      %34 = sbr.rel (0) target = $region17
    $region16: #{policy_network_forward.1} parent=1 // pred_region
      %s36 = ssub.s32 4096, 4096
      %37 = vsyncadd [#allocation6], %s36
      %s38 = sshll.u32 [#allocation5], 4
      %s39 = int_to_ptr.vmem [resolvable:$true] %s38
      %44 = dma.hbm_to_vmem [thread:$0]  %s3, 4096, %s39, [#allocation6], 128, 128, 8
    $region17: #{policy_network_forward.1} parent=1 // pred_fallthru
      _
    // Predicated region
    $region18: #{policy_network_forward.1} parent=1 // pred_check
      _
    $region19: #{policy_network_forward.1} parent=1 // pred_check_branch
      %46 = sbr.rel (0) target = $region21
    $region20: #{policy_network_forward.1} parent=1 // pred_region
      %s48 = ssub.s32 32, 32
      %49 = vsyncadd [#allocation6], %s48
      %s51 = sshll.u32 [#allocation7], 4
      %s52 = int_to_ptr.vmem [resolvable:$true] %s51
      %54 = dma.hbm_to_vmem [thread:$0]  %s4, 32, %s52, [#allocation6]
    $region21: #{policy_network_forward.1} parent=1 // pred_fallthru
      _
    // Predicated region
    $region22: #{policy_network_forward.1} parent=1 // pred_check
      _
    $region23: #{policy_network_forward.1} parent=1 // pred_check_branch
      %56 = sbr.rel (0) target = $region25
    $region24: #{policy_network_forward.1} parent=1 // pred_region
      %s58 = ssub.s32 4096, 4096
      %59 = vsyncadd [#allocation9], %s58
      %s60 = sshll.u32 [#allocation8], 4
      %s61 = int_to_ptr.vmem [resolvable:$true] %s60
      %66 = dma.hbm_to_vmem [thread:$0]  %s5, 4096, %s61, [#allocation9], 128, 128, 8
    $region25: #{policy_network_forward.1} parent=1 // pred_fallthru
      _
    // Predicated region
    $region26: #{policy_network_forward.1} parent=1 // pred_check
      _
    $region27: #{policy_network_forward.1} parent=1 // pred_check_branch
      %68 = sbr.rel (0) target = $region29
    $region28: #{policy_network_forward.1} parent=1 // pred_region
      %s70 = ssub.s32 32, 32
      %71 = vsyncadd [#allocation9], %s70
      %s73 = sshll.u32 [#allocation10], 4
      %s74 = int_to_ptr.vmem [resolvable:$true] %s73
      %76 = dma.hbm_to_vmem [thread:$0]  %s6, 32, %s74, [#allocation9]
    $region29: #{policy_network_forward.1} parent=1 // pred_fallthru
      _
    // Predicated region
    $region30: #{policy_network_forward.1} parent=1 // pred_check
      _
    $region31: #{policy_network_forward.1} parent=1 // pred_check_branch
      %78 = sbr.rel (0) target = $region33
    $region32: #{policy_network_forward.1} parent=1 // pred_region
      %s80 = ssub.s32 2048, 2048
      %81 = vsyncadd [#allocation12], %s80
      %s82 = sshll.u32 [#allocation11], 4
      %s83 = int_to_ptr.vmem [resolvable:$true] %s82
      %88 = dma.hbm_to_vmem [thread:$0]  %s7, 2048, %s83, [#allocation12], 64, 64, 4
    $region33: #{policy_network_forward.1} parent=1 // pred_fallthru
      _
    // Predicated region
    $region34: #{policy_network_forward.1} parent=1 // pred_check
      _
    $region35: #{policy_network_forward.1} parent=1 // pred_check_branch
      %90 = sbr.rel (0) target = $region37
    $region36: #{policy_network_forward.1} parent=1 // pred_region
      %s92 = ssub.s32 16, 16
      %93 = vsyncadd [#allocation12], %s92
      %s95 = sshll.u32 [#allocation13], 4
      %s96 = int_to_ptr.vmem [resolvable:$true] %s95
      %98 = dma.hbm_to_vmem [thread:$0]  %s8, 16, %s96, [#allocation12]
    $region37: #{policy_network_forward.1} parent=1 // pred_fallthru
      _
    // Predicated region
    $region38: #{policy_network_forward.1} parent=1 // pred_check
      _
    $region39: #{policy_network_forward.1} parent=1 // pred_check_branch
      %100 = sbr.rel (0) target = $region41
    $region40: #{policy_network_forward.1} parent=1 // pred_region
      %101 = dma.done [#allocation3], 128
    $region41: #{policy_network_forward.1} parent=1 // pred_fallthru
      _
    // Predicated region
    $region42: #{policy_network_forward.1} parent=1 // pred_check
      _
    $region43: #{policy_network_forward.1} parent=1 // pred_check_branch
      %103 = sbr.rel (0) target = $region45
    $region44: #{policy_network_forward.1} parent=1 // pred_region
      %104 = dma.done [#allocation6], 4096
    $region45: #{policy_network_forward.1} parent=1 // pred_fallthru
      _
    // Predicated region
    $region46: #{policy_network_forward.1} parent=1 // pred_check
      _
    $region47: #{policy_network_forward.1} parent=1 // pred_check_branch
      %106 = sbr.rel (0) target = $region49
    $region48: #{policy_network_forward.1} parent=1 // pred_region
      %107 = dma.done [#allocation6], 32
    $region49: #{policy_network_forward.1} parent=1 // pred_fallthru
      _
    // Predicated region
    $region50: #{policy_network_forward.1} parent=1 // pred_check
      _
    $region51: #{policy_network_forward.1} parent=1 // pred_check_branch
      %109 = sbr.rel (0) target = $region53
    $region52: #{policy_network_forward.1} parent=1 // pred_region
      %110 = dma.done [#allocation9], 4096
    $region53: #{policy_network_forward.1} parent=1 // pred_fallthru
      _
    // Predicated region
    $region54: #{policy_network_forward.1} parent=1 // pred_check
      _
    $region55: #{policy_network_forward.1} parent=1 // pred_check_branch
      %112 = sbr.rel (0) target = $region57
    $region56: #{policy_network_forward.1} parent=1 // pred_region
      %113 = dma.done [#allocation9], 32
    $region57: #{policy_network_forward.1} parent=1 // pred_fallthru
      _
    // Predicated region
    $region58: #{policy_network_forward.1} parent=1 // pred_check
      _
    $region59: #{policy_network_forward.1} parent=1 // pred_check_branch
      %115 = sbr.rel (0) target = $region61
    $region60: #{policy_network_forward.1} parent=1 // pred_region
      %116 = dma.done [#allocation12], 2048
    $region61: #{policy_network_forward.1} parent=1 // pred_fallthru
      _
    // Predicated region
    $region62: #{policy_network_forward.1} parent=1 // pred_check
      _
    $region63: #{policy_network_forward.1} parent=1 // pred_check_branch
      %118 = sbr.rel (0) target = $region65
    $region64: #{policy_network_forward.1} parent=1 // pred_region
      %119 = dma.done [#allocation12], 16
    $region65: #{policy_network_forward.1} parent=1 // pred_fallthru
      _
    %v121 = vld [vmem:[#allocation2] sm:$0xff]
    %v122 = vpack.c.bf16 %v121, %v121
    %v123 = vld [vmem:[%s1] sm:$0xff]
    %v124 = vld [vmem:[%s1 + $0x8] sm:$0xff]
    %v125 = vld [vmem:[%s2] sm:$0x3]
    %v127 = vlaneseq
    %v128 = vshrl.u32 %v127, 7
    %v129 = vsub.s32 0, %v128
    %v130 = vrot.slane %v125, %v129
    %v131 = vlaneseq
    %v132 = vshrl.u32 %v131, 7
    %v133 = vsub.s32 1, %v132
    %v134 = vrot.slane %v125, %v133
    %v139 = vunpack.c.l.b16 %v123
    %v140 = vunpack.c.h.b16 %v123
    %v141 = vunpack.c.l.b16 %v124
    %v142 = vunpack.c.h.b16 %v124
    %v143 = vpack.c.b16 %v141, %v139
    %v144 = vpack.c.b16 %v142, %v140
    %vm147 = vcmask 130048
    %v149 = vsel %vm147, %v122, 0
    %151 = vmatprep.subr.bf16.mxu0 %v144
    %152 = vmatpush1.bf16.msra.mxu0 %v143
    %153 = vmatprep.subr.bf16.mxu0 0
    %154 = vmatpush1.bf16.msra.mxu0 0
    %155 = vmatprep.subr.bf16.mxu0 0
    %156 = vmatpush1.bf16.msra.mxu0 0
    %157 = vmatprep.subr.bf16.mxu0 0
    %158 = vmatpush1.bf16.msra.mxu0 0
    %159 = vmatprep.subr.bf16.mxu0 0
    %160 = vmatpush1.bf16.msra.mxu0 0
    %161 = vmatprep.subr.bf16.mxu0 0
    %162 = vmatpush1.bf16.msra.mxu0 0
    %163 = vmatprep.subr.bf16.mxu0 0
    %164 = vmatpush1.bf16.msra.mxu0 0
    %165 = vmatprep.subr.bf16.mxu0 0
    %166 = vmatpush1.bf16.msra.mxu0 0
    %167 = vmatprep.subr.bf16.mxu0 0
    %168 = vmatpush1.bf16.msra.mxu0 0
    %169 = vmatprep.subr.bf16.mxu0 0
    %170 = vmatpush1.bf16.msra.mxu0 0
    %171 = vmatprep.subr.bf16.mxu0 0
    %172 = vmatpush1.bf16.msra.mxu0 0
    %173 = vmatprep.subr.bf16.mxu0 0
    %174 = vmatpush1.bf16.msra.mxu0 0
    %175 = vmatprep.subr.bf16.mxu0 0
    %176 = vmatpush1.bf16.msra.mxu0 0
    %177 = vmatprep.subr.bf16.mxu0 0
    %178 = vmatpush1.bf16.msra.mxu0 0
    %179 = vmatprep.subr.bf16.mxu0 0
    %180 = vmatpush1.bf16.msra.mxu0 0
    %181 = vmatprep.subr.bf16.mxu0 0
    %182 = vmatpush1.bf16.msra.mxu0 0
    %183 = vmatprep.mubr.bf16.mxu0 0
    %184 = vmatmul.mubr.bf16.gmra.mrb[0].mxu0 %v149
    %v185 = vpop.f32.mrb[0].mxu0
    %v186 = vadd.f32 %v130, %v185
    %v187 = vpop.f32.mrb[0].mxu0
    %v188 = vadd.f32 %v134, %v187
    %v189 = vpop.f32.mrb[0].mxu0
    %v190 = vpop.f32.mrb[0].mxu0
    %191 = vdwg.mxu0
    %v192 = vmax.f32 %v186, 0.0
    %v193 = vmax.f32 %v188, 0.0
    %v194 = vpack.c.bf16 %v192, %v192
    %v195 = vpack.c.bf16 %v193, %v193
    %v196 = vld [vmem:[#allocation5] sm:$0xff]
    %v197 = vld [vmem:[#allocation5 + $0x8] sm:$0xff]
    %v198 = vld [vmem:[#allocation5 + $0x10] sm:$0xff]
    %v199 = vld [vmem:[#allocation5 + $0x18] sm:$0xff]
    %v200 = vld [vmem:[#allocation5 + $0x20] sm:$0xff]
    %v201 = vld [vmem:[#allocation5 + $0x28] sm:$0xff]
    %v202 = vld [vmem:[#allocation5 + $0x30] sm:$0xff]
    %v203 = vld [vmem:[#allocation5 + $0x38] sm:$0xff]
    %v204 = vld [vmem:[#allocation5 + $0x40] sm:$0xff]
    %v205 = vld [vmem:[#allocation5 + $0x48] sm:$0xff]
    %v206 = vld [vmem:[#allocation5 + $0x50] sm:$0xff]
    %v207 = vld [vmem:[#allocation5 + $0x58] sm:$0xff]
    %v208 = vld [vmem:[#allocation5 + $0x60] sm:$0xff]
    %v209 = vld [vmem:[#allocation5 + $0x68] sm:$0xff]
    %v210 = vld [vmem:[#allocation5 + $0x70] sm:$0xff]
    %v211 = vld [vmem:[#allocation5 + $0x78] sm:$0xff]
    %v212 = vld [vmem:[#allocation5 + $0x80] sm:$0xff]
    %v213 = vld [vmem:[#allocation5 + $0x88] sm:$0xff]
    %v214 = vld [vmem:[#allocation5 + $0x90] sm:$0xff]
    %v215 = vld [vmem:[#allocation5 + $0x98] sm:$0xff]
    %v216 = vld [vmem:[#allocation5 + $0xa0] sm:$0xff]
    %v217 = vld [vmem:[#allocation5 + $0xa8] sm:$0xff]
    %v218 = vld [vmem:[#allocation5 + $0xb0] sm:$0xff]
    %v219 = vld [vmem:[#allocation5 + $0xb8] sm:$0xff]
    %v220 = vld [vmem:[#allocation5 + $0xc0] sm:$0xff]
    %v221 = vld [vmem:[#allocation5 + $0xc8] sm:$0xff]
    %v222 = vld [vmem:[#allocation5 + $0xd0] sm:$0xff]
    %v223 = vld [vmem:[#allocation5 + $0xd8] sm:$0xff]
    %v224 = vld [vmem:[#allocation5 + $0xe0] sm:$0xff]
    %v225 = vld [vmem:[#allocation5 + $0xe8] sm:$0xff]
    %v226 = vld [vmem:[#allocation5 + $0xf0] sm:$0xff]
    %v227 = vld [vmem:[#allocation5 + $0xf8] sm:$0xff]
    %v228 = vld [vmem:[#allocation7] sm:$0x3]
    %v230 = vlaneseq
    %v231 = vshrl.u32 %v230, 7
    %v232 = vsub.s32 0, %v231
    %v233 = vrot.slane %v228, %v232
    %v234 = vlaneseq
    %v235 = vshrl.u32 %v234, 7
    %v236 = vsub.s32 1, %v235
    %v237 = vrot.slane %v228, %v236
    %v272 = vunpack.c.l.b16 %v196
    %v273 = vunpack.c.h.b16 %v196
    %v274 = vunpack.c.l.b16 %v197
    %v275 = vunpack.c.h.b16 %v197
    %v276 = vunpack.c.l.b16 %v198
    %v277 = vunpack.c.h.b16 %v198
    %v278 = vunpack.c.l.b16 %v199
    %v279 = vunpack.c.h.b16 %v199
    %v280 = vunpack.c.l.b16 %v200
    %v281 = vunpack.c.h.b16 %v200
    %v282 = vunpack.c.l.b16 %v201
    %v283 = vunpack.c.h.b16 %v201
    %v284 = vunpack.c.l.b16 %v202
    %v285 = vunpack.c.h.b16 %v202
    %v286 = vunpack.c.l.b16 %v203
    %v287 = vunpack.c.h.b16 %v203
    %v288 = vunpack.c.l.b16 %v204
    %v289 = vunpack.c.h.b16 %v204
    %v290 = vunpack.c.l.b16 %v205
    %v291 = vunpack.c.h.b16 %v205
    %v292 = vunpack.c.l.b16 %v206
    %v293 = vunpack.c.h.b16 %v206
    %v294 = vunpack.c.l.b16 %v207
    %v295 = vunpack.c.h.b16 %v207
    %v296 = vunpack.c.l.b16 %v208
    %v297 = vunpack.c.h.b16 %v208
    %v298 = vunpack.c.l.b16 %v209
    %v299 = vunpack.c.h.b16 %v209
    %v300 = vunpack.c.l.b16 %v210
    %v301 = vunpack.c.h.b16 %v210
    %v302 = vunpack.c.l.b16 %v211
    %v303 = vunpack.c.h.b16 %v211
    %v304 = vunpack.c.l.b16 %v212
    %v305 = vunpack.c.h.b16 %v212
    %v306 = vunpack.c.l.b16 %v213
    %v307 = vunpack.c.h.b16 %v213
    %v308 = vunpack.c.l.b16 %v214
    %v309 = vunpack.c.h.b16 %v214
    %v310 = vunpack.c.l.b16 %v215
    %v311 = vunpack.c.h.b16 %v215
    %v312 = vunpack.c.l.b16 %v216
    %v313 = vunpack.c.h.b16 %v216
    %v314 = vunpack.c.l.b16 %v217
    %v315 = vunpack.c.h.b16 %v217
    %v316 = vunpack.c.l.b16 %v218
    %v317 = vunpack.c.h.b16 %v218
    %v318 = vunpack.c.l.b16 %v219
    %v319 = vunpack.c.h.b16 %v219
    %v320 = vunpack.c.l.b16 %v220
    %v321 = vunpack.c.h.b16 %v220
    %v322 = vunpack.c.l.b16 %v221
    %v323 = vunpack.c.h.b16 %v221
    %v324 = vunpack.c.l.b16 %v222
    %v325 = vunpack.c.h.b16 %v222
    %v326 = vunpack.c.l.b16 %v223
    %v327 = vunpack.c.h.b16 %v223
    %v328 = vunpack.c.l.b16 %v224
    %v329 = vunpack.c.h.b16 %v224
    %v330 = vunpack.c.l.b16 %v225
    %v331 = vunpack.c.h.b16 %v225
    %v332 = vunpack.c.l.b16 %v226
    %v333 = vunpack.c.h.b16 %v226
    %v334 = vunpack.c.l.b16 %v227
    %v335 = vunpack.c.h.b16 %v227
    %v336 = vpack.c.b16 %v274, %v272
    %v337 = vpack.c.b16 %v275, %v273
    %v338 = vpack.c.b16 %v278, %v276
    %v339 = vpack.c.b16 %v279, %v277
    %v340 = vpack.c.b16 %v282, %v280
    %v341 = vpack.c.b16 %v283, %v281
    %v342 = vpack.c.b16 %v286, %v284
    %v343 = vpack.c.b16 %v287, %v285
    %v344 = vpack.c.b16 %v290, %v288
    %v345 = vpack.c.b16 %v291, %v289
    %v346 = vpack.c.b16 %v294, %v292
    %v347 = vpack.c.b16 %v295, %v293
    %v348 = vpack.c.b16 %v298, %v296
    %v349 = vpack.c.b16 %v299, %v297
    %v350 = vpack.c.b16 %v302, %v300
    %v351 = vpack.c.b16 %v303, %v301
    %v352 = vpack.c.b16 %v306, %v304
    %v353 = vpack.c.b16 %v307, %v305
    %v354 = vpack.c.b16 %v310, %v308
    %v355 = vpack.c.b16 %v311, %v309
    %v356 = vpack.c.b16 %v314, %v312
    %v357 = vpack.c.b16 %v315, %v313
    %v358 = vpack.c.b16 %v318, %v316
    %v359 = vpack.c.b16 %v319, %v317
    %v360 = vpack.c.b16 %v322, %v320
    %v361 = vpack.c.b16 %v323, %v321
    %v362 = vpack.c.b16 %v326, %v324
    %v363 = vpack.c.b16 %v327, %v325
    %v364 = vpack.c.b16 %v330, %v328
    %v365 = vpack.c.b16 %v331, %v329
    %v366 = vpack.c.b16 %v334, %v332
    %v367 = vpack.c.b16 %v335, %v333
    %400 = vmatprep.subr.bf16.mxu0 %v337
    %401 = vmatpush1.bf16.msra.mxu0 %v336
    %402 = vmatprep.subr.bf16.mxu0 %v339
    %403 = vmatpush1.bf16.msra.mxu0 %v338
    %404 = vmatprep.subr.bf16.mxu0 %v341
    %405 = vmatpush1.bf16.msra.mxu0 %v340
    %406 = vmatprep.subr.bf16.mxu0 %v343
    %407 = vmatpush1.bf16.msra.mxu0 %v342
    %408 = vmatprep.subr.bf16.mxu0 %v345
    %409 = vmatpush1.bf16.msra.mxu0 %v344
    %410 = vmatprep.subr.bf16.mxu0 %v347
    %411 = vmatpush1.bf16.msra.mxu0 %v346
    %412 = vmatprep.subr.bf16.mxu0 %v349
    %413 = vmatpush1.bf16.msra.mxu0 %v348
    %414 = vmatprep.subr.bf16.mxu0 %v351
    %415 = vmatpush1.bf16.msra.mxu0 %v350
    %416 = vmatprep.subr.bf16.mxu0 %v353
    %417 = vmatpush1.bf16.msra.mxu0 %v352
    %418 = vmatprep.subr.bf16.mxu0 %v355
    %419 = vmatpush1.bf16.msra.mxu0 %v354
    %420 = vmatprep.subr.bf16.mxu0 %v357
    %421 = vmatpush1.bf16.msra.mxu0 %v356
    %422 = vmatprep.subr.bf16.mxu0 %v359
    %423 = vmatpush1.bf16.msra.mxu0 %v358
    %424 = vmatprep.subr.bf16.mxu0 %v361
    %425 = vmatpush1.bf16.msra.mxu0 %v360
    %426 = vmatprep.subr.bf16.mxu0 %v363
    %427 = vmatpush1.bf16.msra.mxu0 %v362
    %428 = vmatprep.subr.bf16.mxu0 %v365
    %429 = vmatpush1.bf16.msra.mxu0 %v364
    %430 = vmatprep.subr.bf16.mxu0 %v367
    %431 = vmatpush1.bf16.msra.mxu0 %v366
    %432 = vmatprep.mubr.bf16.mxu0 %v195
    %433 = vmatmul.mubr.bf16.gmra.mrb[0].mxu0 %v194
    %v434 = vpop.f32.mrb[0].mxu0
    %v435 = vadd.f32 %v233, %v434
    %v436 = vpop.f32.mrb[0].mxu0
    %v437 = vadd.f32 %v237, %v436
    %v438 = vpop.f32.mrb[0].mxu0
    %v439 = vpop.f32.mrb[0].mxu0
    %440 = vdwg.mxu0
    %v441 = vmax.f32 %v435, 0.0
    %v442 = vmax.f32 %v437, 0.0
    %v443 = vpack.c.bf16 %v441, %v441
    %v444 = vpack.c.bf16 %v442, %v442
    %v445 = vld [vmem:[#allocation8] sm:$0xff]
    %v446 = vld [vmem:[#allocation8 + $0x8] sm:$0xff]
    %v447 = vld [vmem:[#allocation8 + $0x10] sm:$0xff]
    %v448 = vld [vmem:[#allocation8 + $0x18] sm:$0xff]
    %v449 = vld [vmem:[#allocation8 + $0x20] sm:$0xff]
    %v450 = vld [vmem:[#allocation8 + $0x28] sm:$0xff]
    %v451 = vld [vmem:[#allocation8 + $0x30] sm:$0xff]
    %v452 = vld [vmem:[#allocation8 + $0x38] sm:$0xff]
    %v453 = vld [vmem:[#allocation8 + $0x40] sm:$0xff]
    %v454 = vld [vmem:[#allocation8 + $0x48] sm:$0xff]
    %v455 = vld [vmem:[#allocation8 + $0x50] sm:$0xff]
    %v456 = vld [vmem:[#allocation8 + $0x58] sm:$0xff]
    %v457 = vld [vmem:[#allocation8 + $0x60] sm:$0xff]
    %v458 = vld [vmem:[#allocation8 + $0x68] sm:$0xff]
    %v459 = vld [vmem:[#allocation8 + $0x70] sm:$0xff]
    %v460 = vld [vmem:[#allocation8 + $0x78] sm:$0xff]
    %v461 = vld [vmem:[#allocation8 + $0x80] sm:$0xff]
    %v462 = vld [vmem:[#allocation8 + $0x88] sm:$0xff]
    %v463 = vld [vmem:[#allocation8 + $0x90] sm:$0xff]
    %v464 = vld [vmem:[#allocation8 + $0x98] sm:$0xff]
    %v465 = vld [vmem:[#allocation8 + $0xa0] sm:$0xff]
    %v466 = vld [vmem:[#allocation8 + $0xa8] sm:$0xff]
    %v467 = vld [vmem:[#allocation8 + $0xb0] sm:$0xff]
    %v468 = vld [vmem:[#allocation8 + $0xb8] sm:$0xff]
    %v469 = vld [vmem:[#allocation8 + $0xc0] sm:$0xff]
    %v470 = vld [vmem:[#allocation8 + $0xc8] sm:$0xff]
    %v471 = vld [vmem:[#allocation8 + $0xd0] sm:$0xff]
    %v472 = vld [vmem:[#allocation8 + $0xd8] sm:$0xff]
    %v473 = vld [vmem:[#allocation8 + $0xe0] sm:$0xff]
    %v474 = vld [vmem:[#allocation8 + $0xe8] sm:$0xff]
    %v475 = vld [vmem:[#allocation8 + $0xf0] sm:$0xff]
    %v476 = vld [vmem:[#allocation8 + $0xf8] sm:$0xff]
    %v477 = vld [vmem:[#allocation10] sm:$0x3]
    %v479 = vlaneseq
    %v480 = vshrl.u32 %v479, 7
    %v481 = vsub.s32 0, %v480
    %v482 = vrot.slane %v477, %v481
    %v483 = vlaneseq
    %v484 = vshrl.u32 %v483, 7
    %v485 = vsub.s32 1, %v484
    %v486 = vrot.slane %v477, %v485
    %v521 = vunpack.c.l.b16 %v445
    %v522 = vunpack.c.h.b16 %v445
    %v523 = vunpack.c.l.b16 %v446
    %v524 = vunpack.c.h.b16 %v446
    %v525 = vunpack.c.l.b16 %v447
    %v526 = vunpack.c.h.b16 %v447
    %v527 = vunpack.c.l.b16 %v448
    %v528 = vunpack.c.h.b16 %v448
    %v529 = vunpack.c.l.b16 %v449
    %v530 = vunpack.c.h.b16 %v449
    %v531 = vunpack.c.l.b16 %v450
    %v532 = vunpack.c.h.b16 %v450
    %v533 = vunpack.c.l.b16 %v451
    %v534 = vunpack.c.h.b16 %v451
    %v535 = vunpack.c.l.b16 %v452
    %v536 = vunpack.c.h.b16 %v452
    %v537 = vunpack.c.l.b16 %v453
    %v538 = vunpack.c.h.b16 %v453
    %v539 = vunpack.c.l.b16 %v454
    %v540 = vunpack.c.h.b16 %v454
    %v541 = vunpack.c.l.b16 %v455
    %v542 = vunpack.c.h.b16 %v455
    %v543 = vunpack.c.l.b16 %v456
    %v544 = vunpack.c.h.b16 %v456
    %v545 = vunpack.c.l.b16 %v457
    %v546 = vunpack.c.h.b16 %v457
    %v547 = vunpack.c.l.b16 %v458
    %v548 = vunpack.c.h.b16 %v458
    %v549 = vunpack.c.l.b16 %v459
    %v550 = vunpack.c.h.b16 %v459
    %v551 = vunpack.c.l.b16 %v460
    %v552 = vunpack.c.h.b16 %v460
    %v553 = vunpack.c.l.b16 %v461
    %v554 = vunpack.c.h.b16 %v461
    %v555 = vunpack.c.l.b16 %v462
    %v556 = vunpack.c.h.b16 %v462
    %v557 = vunpack.c.l.b16 %v463
    %v558 = vunpack.c.h.b16 %v463
    %v559 = vunpack.c.l.b16 %v464
    %v560 = vunpack.c.h.b16 %v464
    %v561 = vunpack.c.l.b16 %v465
    %v562 = vunpack.c.h.b16 %v465
    %v563 = vunpack.c.l.b16 %v466
    %v564 = vunpack.c.h.b16 %v466
    %v565 = vunpack.c.l.b16 %v467
    %v566 = vunpack.c.h.b16 %v467
    %v567 = vunpack.c.l.b16 %v468
    %v568 = vunpack.c.h.b16 %v468
    %v569 = vunpack.c.l.b16 %v469
    %v570 = vunpack.c.h.b16 %v469
    %v571 = vunpack.c.l.b16 %v470
    %v572 = vunpack.c.h.b16 %v470
    %v573 = vunpack.c.l.b16 %v471
    %v574 = vunpack.c.h.b16 %v471
    %v575 = vunpack.c.l.b16 %v472
    %v576 = vunpack.c.h.b16 %v472
    %v577 = vunpack.c.l.b16 %v473
    %v578 = vunpack.c.h.b16 %v473
    %v579 = vunpack.c.l.b16 %v474
    %v580 = vunpack.c.h.b16 %v474
    %v581 = vunpack.c.l.b16 %v475
    %v582 = vunpack.c.h.b16 %v475
    %v583 = vunpack.c.l.b16 %v476
    %v584 = vunpack.c.h.b16 %v476
    %v585 = vpack.c.b16 %v523, %v521
    %v586 = vpack.c.b16 %v524, %v522
    %v587 = vpack.c.b16 %v527, %v525
    %v588 = vpack.c.b16 %v528, %v526
    %v589 = vpack.c.b16 %v531, %v529
    %v590 = vpack.c.b16 %v532, %v530
    %v591 = vpack.c.b16 %v535, %v533
    %v592 = vpack.c.b16 %v536, %v534
    %v593 = vpack.c.b16 %v539, %v537
    %v594 = vpack.c.b16 %v540, %v538
    %v595 = vpack.c.b16 %v543, %v541
    %v596 = vpack.c.b16 %v544, %v542
    %v597 = vpack.c.b16 %v547, %v545
    %v598 = vpack.c.b16 %v548, %v546
    %v599 = vpack.c.b16 %v551, %v549
    %v600 = vpack.c.b16 %v552, %v550
    %v601 = vpack.c.b16 %v555, %v553
    %v602 = vpack.c.b16 %v556, %v554
    %v603 = vpack.c.b16 %v559, %v557
    %v604 = vpack.c.b16 %v560, %v558
    %v605 = vpack.c.b16 %v563, %v561
    %v606 = vpack.c.b16 %v564, %v562
    %v607 = vpack.c.b16 %v567, %v565
    %v608 = vpack.c.b16 %v568, %v566
    %v609 = vpack.c.b16 %v571, %v569
    %v610 = vpack.c.b16 %v572, %v570
    %v611 = vpack.c.b16 %v575, %v573
    %v612 = vpack.c.b16 %v576, %v574
    %v613 = vpack.c.b16 %v579, %v577
    %v614 = vpack.c.b16 %v580, %v578
    %v615 = vpack.c.b16 %v583, %v581
    %v616 = vpack.c.b16 %v584, %v582
    %649 = vmatprep.subr.bf16.mxu0 %v586
    %650 = vmatpush1.bf16.msra.mxu0 %v585
    %651 = vmatprep.subr.bf16.mxu0 %v588
    %652 = vmatpush1.bf16.msra.mxu0 %v587
    %653 = vmatprep.subr.bf16.mxu0 %v590
    %654 = vmatpush1.bf16.msra.mxu0 %v589
    %655 = vmatprep.subr.bf16.mxu0 %v592
    %656 = vmatpush1.bf16.msra.mxu0 %v591
    %657 = vmatprep.subr.bf16.mxu0 %v594
    %658 = vmatpush1.bf16.msra.mxu0 %v593
    %659 = vmatprep.subr.bf16.mxu0 %v596
    %660 = vmatpush1.bf16.msra.mxu0 %v595
    %661 = vmatprep.subr.bf16.mxu0 %v598
    %662 = vmatpush1.bf16.msra.mxu0 %v597
    %663 = vmatprep.subr.bf16.mxu0 %v600
    %664 = vmatpush1.bf16.msra.mxu0 %v599
    %665 = vmatprep.subr.bf16.mxu0 %v602
    %666 = vmatpush1.bf16.msra.mxu0 %v601
    %667 = vmatprep.subr.bf16.mxu0 %v604
    %668 = vmatpush1.bf16.msra.mxu0 %v603
    %669 = vmatprep.subr.bf16.mxu0 %v606
    %670 = vmatpush1.bf16.msra.mxu0 %v605
    %671 = vmatprep.subr.bf16.mxu0 %v608
    %672 = vmatpush1.bf16.msra.mxu0 %v607
    %673 = vmatprep.subr.bf16.mxu0 %v610
    %674 = vmatpush1.bf16.msra.mxu0 %v609
    %675 = vmatprep.subr.bf16.mxu0 %v612
    %676 = vmatpush1.bf16.msra.mxu0 %v611
    %677 = vmatprep.subr.bf16.mxu0 %v614
    %678 = vmatpush1.bf16.msra.mxu0 %v613
    %679 = vmatprep.subr.bf16.mxu0 %v616
    %680 = vmatpush1.bf16.msra.mxu0 %v615
    %681 = vmatprep.mubr.bf16.mxu0 %v444
    %682 = vmatmul.mubr.bf16.gmra.mrb[0].mxu0 %v443
    %v683 = vpop.f32.mrb[0].mxu0
    %v684 = vadd.f32 %v482, %v683
    %v685 = vpop.f32.mrb[0].mxu0
    %v686 = vadd.f32 %v486, %v685
    %v687 = vpop.f32.mrb[0].mxu0
    %v688 = vpop.f32.mrb[0].mxu0
    %689 = vdwg.mxu0
    %v690 = vmax.f32 %v684, 0.0
    %v691 = vmax.f32 %v686, 0.0
    %v692 = vpack.c.bf16 %v690, %v690
    %v693 = vpack.c.bf16 %v691, %v691
    %v694 = vld [vmem:[#allocation11] sm:$0xf]
    %v695 = vld [vmem:[#allocation11 + $0x4] sm:$0xf]
    %v696 = vld [vmem:[#allocation11 + $0x8] sm:$0xf]
    %v697 = vld [vmem:[#allocation11 + $0xc] sm:$0xf]
    %v698 = vld [vmem:[#allocation11 + $0x10] sm:$0xf]
    %v699 = vld [vmem:[#allocation11 + $0x14] sm:$0xf]
    %v700 = vld [vmem:[#allocation11 + $0x18] sm:$0xf]
    %v701 = vld [vmem:[#allocation11 + $0x1c] sm:$0xf]
    %v702 = vld [vmem:[#allocation11 + $0x20] sm:$0xf]
    %v703 = vld [vmem:[#allocation11 + $0x24] sm:$0xf]
    %v704 = vld [vmem:[#allocation11 + $0x28] sm:$0xf]
    %v705 = vld [vmem:[#allocation11 + $0x2c] sm:$0xf]
    %v706 = vld [vmem:[#allocation11 + $0x30] sm:$0xf]
    %v707 = vld [vmem:[#allocation11 + $0x34] sm:$0xf]
    %v708 = vld [vmem:[#allocation11 + $0x38] sm:$0xf]
    %v709 = vld [vmem:[#allocation11 + $0x3c] sm:$0xf]
    %v710 = vld [vmem:[#allocation11 + $0x40] sm:$0xf]
    %v711 = vld [vmem:[#allocation11 + $0x44] sm:$0xf]
    %v712 = vld [vmem:[#allocation11 + $0x48] sm:$0xf]
    %v713 = vld [vmem:[#allocation11 + $0x4c] sm:$0xf]
    %v714 = vld [vmem:[#allocation11 + $0x50] sm:$0xf]
    %v715 = vld [vmem:[#allocation11 + $0x54] sm:$0xf]
    %v716 = vld [vmem:[#allocation11 + $0x58] sm:$0xf]
    %v717 = vld [vmem:[#allocation11 + $0x5c] sm:$0xf]
    %v718 = vld [vmem:[#allocation11 + $0x60] sm:$0xf]
    %v719 = vld [vmem:[#allocation11 + $0x64] sm:$0xf]
    %v720 = vld [vmem:[#allocation11 + $0x68] sm:$0xf]
    %v721 = vld [vmem:[#allocation11 + $0x6c] sm:$0xf]
    %v722 = vld [vmem:[#allocation11 + $0x70] sm:$0xf]
    %v723 = vld [vmem:[#allocation11 + $0x74] sm:$0xf]
    %v724 = vld [vmem:[#allocation11 + $0x78] sm:$0xf]
    %v725 = vld [vmem:[#allocation11 + $0x7c] sm:$0xf]
    %v726 = vld [vmem:[#allocation13] sm:$0x1]
    %v728 = vlaneseq
    %v729 = vshrl.u32 %v728, 7
    %v730 = vsub.s32 0, %v729
    %v731 = vrot.slane %v726, %v730
    %v765 = vunpack.c.l.b16 %v694
    %v766 = vunpack.c.l.b16 %v695
    %v767 = vunpack.c.l.b16 %v696
    %v768 = vunpack.c.l.b16 %v697
    %v769 = vunpack.c.l.b16 %v698
    %v770 = vunpack.c.l.b16 %v699
    %v771 = vunpack.c.l.b16 %v700
    %v772 = vunpack.c.l.b16 %v701
    %v773 = vunpack.c.l.b16 %v702
    %v774 = vunpack.c.l.b16 %v703
    %v775 = vunpack.c.l.b16 %v704
    %v776 = vunpack.c.l.b16 %v705
    %v777 = vunpack.c.l.b16 %v706
    %v778 = vunpack.c.l.b16 %v707
    %v779 = vunpack.c.l.b16 %v708
    %v780 = vunpack.c.l.b16 %v709
    %v781 = vunpack.c.l.b16 %v710
    %v782 = vunpack.c.l.b16 %v711
    %v783 = vunpack.c.l.b16 %v712
    %v784 = vunpack.c.l.b16 %v713
    %v785 = vunpack.c.l.b16 %v714
    %v786 = vunpack.c.l.b16 %v715
    %v787 = vunpack.c.l.b16 %v716
    %v788 = vunpack.c.l.b16 %v717
    %v789 = vunpack.c.l.b16 %v718
    %v790 = vunpack.c.l.b16 %v719
    %v791 = vunpack.c.l.b16 %v720
    %v792 = vunpack.c.l.b16 %v721
    %v793 = vunpack.c.l.b16 %v722
    %v794 = vunpack.c.l.b16 %v723
    %v795 = vunpack.c.l.b16 %v724
    %v796 = vunpack.c.l.b16 %v725
    %v797 = vpack.c.b16 %v766, %v765
    %v798 = vpack.c.b16 %v768, %v767
    %v799 = vpack.c.b16 %v770, %v769
    %v800 = vpack.c.b16 %v772, %v771
    %v801 = vpack.c.b16 %v774, %v773
    %v802 = vpack.c.b16 %v776, %v775
    %v803 = vpack.c.b16 %v778, %v777
    %v804 = vpack.c.b16 %v780, %v779
    %v805 = vpack.c.b16 %v782, %v781
    %v806 = vpack.c.b16 %v784, %v783
    %v807 = vpack.c.b16 %v786, %v785
    %v808 = vpack.c.b16 %v788, %v787
    %v809 = vpack.c.b16 %v790, %v789
    %v810 = vpack.c.b16 %v792, %v791
    %v811 = vpack.c.b16 %v794, %v793
    %v812 = vpack.c.b16 %v796, %v795
    %829 = vmatprep.subr.bf16.mxu0 0
    %830 = vmatpush1.bf16.msra.mxu0 %v797
    %831 = vmatprep.subr.bf16.mxu0 0
    %832 = vmatpush1.bf16.msra.mxu0 %v798
    %833 = vmatprep.subr.bf16.mxu0 0
    %834 = vmatpush1.bf16.msra.mxu0 %v799
    %835 = vmatprep.subr.bf16.mxu0 0
    %836 = vmatpush1.bf16.msra.mxu0 %v800
    %837 = vmatprep.subr.bf16.mxu0 0
    %838 = vmatpush1.bf16.msra.mxu0 %v801
    %839 = vmatprep.subr.bf16.mxu0 0
    %840 = vmatpush1.bf16.msra.mxu0 %v802
    %841 = vmatprep.subr.bf16.mxu0 0
    %842 = vmatpush1.bf16.msra.mxu0 %v803
    %843 = vmatprep.subr.bf16.mxu0 0
    %844 = vmatpush1.bf16.msra.mxu0 %v804
    %845 = vmatprep.subr.bf16.mxu0 0
    %846 = vmatpush1.bf16.msra.mxu0 %v805
    %847 = vmatprep.subr.bf16.mxu0 0
    %848 = vmatpush1.bf16.msra.mxu0 %v806
    %849 = vmatprep.subr.bf16.mxu0 0
    %850 = vmatpush1.bf16.msra.mxu0 %v807
    %851 = vmatprep.subr.bf16.mxu0 0
    %852 = vmatpush1.bf16.msra.mxu0 %v808
    %853 = vmatprep.subr.bf16.mxu0 0
    %854 = vmatpush1.bf16.msra.mxu0 %v809
    %855 = vmatprep.subr.bf16.mxu0 0
    %856 = vmatpush1.bf16.msra.mxu0 %v810
    %857 = vmatprep.subr.bf16.mxu0 0
    %858 = vmatpush1.bf16.msra.mxu0 %v811
    %859 = vmatprep.subr.bf16.mxu0 0
    %860 = vmatpush1.bf16.msra.mxu0 %v812
    %861 = vmatprep.mubr.bf16.mxu0 %v693
    %862 = vmatmul.mubr.bf16.gmra.mrb[0].mxu0 %v692
    %v863 = vpop.f32.mrb[0].mxu0
    %v864 = vadd.f32 %v731, %v863
    %v865 = vpop.f32.mrb[0].mxu0
    %v866 = vpop.f32.mrb[0].mxu0
    %v867 = vpop.f32.mrb[0].mxu0
    %868 = vdwg.mxu0
    %v869 = vtanh.pop %v864
    %870 = vst [vmem:[#allocation14] sm:$0xff] %v869
    // Predicated region
    $region66: #{policy_network_forward.1} parent=1 // pred_check
      _
    $region67: #{policy_network_forward.1} parent=1 // pred_check_branch
      %872 = sbr.rel (0) target = $region69
    $region68: #{policy_network_forward.1} parent=1 // pred_region
      %s874 = ssub.s32 128, 128
      %875 = vsyncadd [#allocation4], %s874
      %s877 = sshll.u32 [#allocation14], 4
      %s878 = int_to_ptr.vmem [resolvable:$true] %s877
      %880 = dma.vmem_to_hbm [thread:$0]  %s878, 128, %s9, [#allocation4]
    $region69: #{policy_network_forward.1} parent=1 // pred_fallthru
      _
    // Predicated region
    $region70: #{policy_network_forward.1} parent=1 // pred_check
      _
    $region71: #{policy_network_forward.1} parent=1 // pred_check_branch
      %882 = sbr.rel (0) target = $region73
    $region72: #{policy_network_forward.1} parent=1 // pred_region
      %883 = dma.done [#allocation4], 128
    $region73: #{policy_network_forward.1} parent=1 // pred_fallthru
      _
    %884 = vsyncpa [#allocation3], 1
    %885 = vsyncpa [#allocation6], 1
    %886 = vsyncpa [#allocation9], 1
    %887 = vsyncpa [#allocation12], 1
    %888 = vsyncpa [#allocation4], 1

</llo_original>
